<compile_context>
chip_gen: v7x
topology: tpu7x:2x2x1
jax: 0.10.0
libtpu: 0.0.40
codegen_flags: <defaults>
</compile_context>

<pallas_src>
import jax
import jax.numpy as jnp
from jax.experimental import pallas as pl
from jax.experimental.pallas import tpu as pltpu

INPUT_DIM = 10
HIDDEN_DIM = 128
ACTION_DIM = 4

# Batch rows (lanes) per grid step.  With the lane-dense layout, a 4096-wide
# tile costs ~2 MiB for the f32 hidden activations + ~1 MiB bf16 copy +
# ~0.5 MiB double-buffered input/output blocks -> well under the default
# scoped-VMEM limit on v5e (16 MiB) and v6e/v7x (32 MiB), while amortizing the
# ~0.35 us per-grid-step overhead.
MAX_TILE_B = 4096


def _cdiv(a, b):
    return -(-a // b)


def _round_up(a, b):
    return _cdiv(a, b) * b


def _choose_tiling(batch):
    """Pick (tile_b, steps) for the 1-D batch grid (batch lives on the lane axis)."""
    if batch <= MAX_TILE_B:
        return batch, 1                       # single full block (always layout-legal)
    steps = _cdiv(batch, MAX_TILE_B)
    if steps % 2:                             # even step count: both v7x TCs stay busy
        steps += 1
    tile_b = _round_up(_cdiv(batch, steps), 128)   # lane axis must be a 128-multiple
    steps = _cdiv(batch, tile_b)
    return tile_b, steps


def policy_kernel(x_ref, w1_ref, b1_ref, w2_ref, b2_ref, o_ref):
    # Lane-dense (batch-on-lanes) layout:
    #   x_ref:  (INPUT_DIM, tile_b)      f32   streamed
    #   w1_ref: (HIDDEN_DIM, INPUT_DIM)  bf16  resident across grid steps
    #   b1_ref: (HIDDEN_DIM, 1)          f32
    #   w2_ref: (ACTION_DIM, HIDDEN_DIM) bf16
    #   b2_ref: (ACTION_DIM, 1)          f32
    #   o_ref:  (ACTION_DIM, tile_b)     f32
    x = x_ref[...].astype(w1_ref.dtype)

    # Linear(10 -> 128) + ReLU: bf16 MXU matmul, f32 accumulation, f32 epilogue.
    h = jnp.dot(w1_ref[...], x, preferred_element_type=jnp.float32)
    h = jnp.maximum(h + b1_ref[...], 0.0)

    # Linear(128 -> 4)
    logits = jnp.dot(w2_ref[...], h.astype(w2_ref.dtype),
                     preferred_element_type=jnp.float32) + b2_ref[...]

    # Softmax over the 4 action rows (sublane reduction -> cheap XLU work;
    # XLU slot is otherwise idle here).  Numerically stable, f32.
    m = jnp.max(logits, axis=0, keepdims=True)
    e = jnp.exp(logits - m)
    denom = jnp.sum(e, axis=0, keepdims=True)
    # approx reciprocal runs on the otherwise-idle EUP slot; probs sum to 1
    # within ~1e-3 of f32 exact.
    o_ref[...] = (e * pl.reciprocal(denom, approx=True)).astype(o_ref.dtype)


def prepare_params(w1, b1, w2, b2, compute_dtype=jnp.bfloat16):
    """One-time layout/dtype prep (hoisted out of the per-call hot path).

    Weights stay in PyTorch-native (out, in) layout (the kernel computes
    W @ x with batch on lanes) and are cast to bf16 for the MXU; biases
    become f32 column vectors that broadcast over the lane (batch) axis.
    """
    w1_c = jnp.asarray(w1, compute_dtype)                  # (HIDDEN_DIM, INPUT_DIM)
    b1_col = jnp.asarray(b1.reshape(-1, 1), jnp.float32)   # (HIDDEN_DIM, 1)
    w2_c = jnp.asarray(w2, compute_dtype)                  # (ACTION_DIM, HIDDEN_DIM)
    b2_col = jnp.asarray(b2.reshape(-1, 1), jnp.float32)   # (ACTION_DIM, 1)
    return w1_c, b1_col, w2_c, b2_col


@jax.jit
def policy_forward(state, w1_c, b1_col, w2_c, b2_col):
    """state: (B, INPUT_DIM) f32.  Params must already be prepared via prepare_params.

    Returns probs of shape (B, ACTION_DIM).
    """
    # NOTE: for tiny RL batches (B ~ 2) a plain-jnp MLP is preferable (the
    # pallas_call launch overhead dominates); the kernel pays off for large
    # rollout/eval batches.  We keep a single code path here for simplicity.
    B, in_dim = state.shape
    hid = w1_c.shape[0]
    act = w2_c.shape[0]

    tile_b, steps = _choose_tiling(B)
    b_pad = tile_b * steps

    # Batch-on-lanes layout; zero-pad ragged tail (softmax of zeros is finite,
    # padded columns are sliced away below).
    x_t = state.T                                          # (INPUT_DIM, B)
    if b_pad != B:
        x_t = jnp.pad(x_t, ((0, 0), (0, b_pad - B)))

    param_bytes = (w1_c.size * w1_c.dtype.itemsize + b1_col.size * 4
                   + w2_c.size * w2_c.dtype.itemsize + b2_col.size * 4)
    cost = pl.CostEstimate(
        flops=2 * b_pad * (in_dim * hid + hid * act),
        transcendentals=act * b_pad,
        bytes_accessed=b_pad * (in_dim + act) * 4 + param_bytes,
    )

    out_t = pl.pallas_call(
        policy_kernel,
        out_shape=jax.ShapeDtypeStruct((act, b_pad), jnp.float32),
        grid=(steps,),
        in_specs=[
            pl.BlockSpec((in_dim, tile_b), lambda i: (0, i)),   # streamed state (lane-dense)
            pl.BlockSpec((hid, in_dim), lambda i: (0, 0)),      # resident W1 (out,in)
            pl.BlockSpec((hid, 1), lambda i: (0, 0)),
            pl.BlockSpec((act, hid), lambda i: (0, 0)),         # resident W2 (out,in)
            pl.BlockSpec((act, 1), lambda i: (0, 0)),
        ],
        out_specs=pl.BlockSpec((act, tile_b), lambda i: (0, i)),  # lane-dense output
        compiler_params=pltpu.CompilerParams(
            dimension_semantics=("parallel",)),   # shard batch across TCs on v7x
        cost_estimate=cost,
    )(x_t, w1_c, b1_col, w2_c, b2_col)

    return out_t[:, :B].T                                  # (B, ACTION_DIM)


def init_params(key):
    """Deterministic init mirroring nn.Linear default (U[-1/sqrt(fan_in), +])."""
    k1, k2, k3, k4 = jax.random.split(key, 4)
    bound1 = 1.0 / jnp.sqrt(INPUT_DIM)
    bound2 = 1.0 / jnp.sqrt(HIDDEN_DIM)
    w1 = jax.random.uniform(k1, (HIDDEN_DIM, INPUT_DIM), jnp.float32, -bound1, bound1)
    b1 = jax.random.uniform(k2, (HIDDEN_DIM,), jnp.float32, -bound1, bound1)
    w2 = jax.random.uniform(k3, (ACTION_DIM, HIDDEN_DIM), jnp.float32, -bound2, bound2)
    b2 = jax.random.uniform(k4, (ACTION_DIM,), jnp.float32, -bound2, bound2)
    return w1, b1, w2, b2


def _reference(state, w1_c, b1_col, w2_c, b2_col):
    """Pure-JAX reference emulating the kernel's bf16-matmul / f32-epilogue path."""
    xd = state.astype(w1_c.dtype).astype(jnp.float32)
    h = jnp.maximum(xd @ w1_c.astype(jnp.float32).T + b1_col.T, 0.0)
    hd = h.astype(w2_c.dtype).astype(jnp.float32)
    logits = hd @ w2_c.astype(jnp.float32).T + b2_col.T
    return jax.nn.softmax(logits, axis=-1)


if __name__ == "__main__":
    key = jax.random.PRNGKey(0)
    k_params, k_state, k_state2 = jax.random.split(key, 3)

    # PyTorch-style params, prepared once (bf16 cast / bias reshape hoisted).
    w1, b1, w2, b2 = init_params(k_params)
    params = prepare_params(w1, b1, w2, b2)

    # --- small batch (matches the module's typical RL use) ---
    state = jax.random.normal(k_state, (2, INPUT_DIM), jnp.float32)
    out = jax.block_until_ready(policy_forward(state, *params))

    ref_bf16 = _reference(state, *params)
    ref_f32 = jax.nn.softmax(jnp.maximum(state @ w1.T + b1, 0.0) @ w2.T + b2, axis=-1)

    assert out.shape == (2, ACTION_DIM)
    assert bool(jnp.all(jnp.isfinite(out)))
    assert jnp.allclose(jnp.sum(out, axis=-1), 1.0, atol=5e-3)   # approx-recip slack
    assert jnp.allclose(out, ref_bf16, atol=5e-3)                # same compute path
    assert jnp.allclose(out, ref_f32, atol=3e-2)                 # vs full-f32 PyTorch math

    # --- larger ragged batch: multi-step grid (even step count), resident
    #     weights, zero-padded tail ---
    B2 = 2 * MAX_TILE_B + 500
    state2 = jax.random.normal(k_state2, (B2, INPUT_DIM), jnp.float32)
    out2 = jax.block_until_ready(policy_forward(state2, *params))
    ref2 = _reference(state2, *params)

    assert out2.shape == (B2, ACTION_DIM)
    assert bool(jnp.all(jnp.isfinite(out2)))
    assert jnp.allclose(jnp.sum(out2, axis=-1), 1.0, atol=5e-3)
    assert jnp.allclose(out2, ref2, atol=5e-3)

    print("KERNEL_OK")
</pallas_src>

<mosaic_0001>
module attributes {stable_mosaic.version = 11 : i64} {
  func.func @policy_kernel(%arg0: i32, %arg1: memref<10x2xf32, #tpu.memory_space<vmem>>, %arg2: memref<128x10xbf16, #tpu.memory_space<vmem>>, %arg3: memref<128x1xf32, #tpu.memory_space<vmem>>, %arg4: memref<4x128xbf16, #tpu.memory_space<vmem>>, %arg5: memref<4x1xf32, #tpu.memory_space<vmem>>, %arg6: memref<4x2xf32, #tpu.memory_space<vmem>>) attributes {dimension_semantics = [#tpu.dimension_semantics<parallel>], iteration_bounds = array<i64: 1>, scalar_prefetch = 0 : i64, scratch_operands = 0 : i64, tpu.core_type = #tpu.core_type<tc>, window_params = [{transform_indices = @transform_0, window_bounds = array<i64: 10, 2>}, {pipeline_mode = #tpu.pipeline_mode<synchronous>, transform_indices = @transform_1, window_bounds = array<i64: 128, 10>}, {pipeline_mode = #tpu.pipeline_mode<synchronous>, transform_indices = @transform_2, window_bounds = array<i64: 128, 1>}, {pipeline_mode = #tpu.pipeline_mode<synchronous>, transform_indices = @transform_3, window_bounds = array<i64: 4, 128>}, {pipeline_mode = #tpu.pipeline_mode<synchronous>, transform_indices = @transform_4, window_bounds = array<i64: 4, 1>}, {transform_indices = @transform_5, window_bounds = array<i64: 4, 2>}]} {
    %c0 = arith.constant 0 : index
    %c0_0 = arith.constant 0 : index
    %0 = vector.load %arg1[%c0, %c0_0] : memref<10x2xf32, #tpu.memory_space<vmem>>, vector<10x2xf32>
    %1 = arith.truncf %0 : vector<10x2xf32> to vector<10x2xbf16>
    %c0_1 = arith.constant 0 : index
    %c0_2 = arith.constant 0 : index
    %2 = vector.load %arg2[%c0_1, %c0_2] : memref<128x10xbf16, #tpu.memory_space<vmem>>, vector<128x10xbf16>
    %cst = arith.constant dense<0.000000e+00> : vector<128x2xf32>
    %3 = tpu.matmul %2, %1, %cst {dimension_numbers = #tpu.dot_dimension_numbers<[1], [0], [0], [1], [0, 0, 1, 1], [], []>} : vector<128x10xbf16>, vector<10x2xbf16>, vector<128x2xf32> -> vector<128x2xf32>
    %c0_3 = arith.constant 0 : index
    %c0_4 = arith.constant 0 : index
    %4 = vector.load %arg3[%c0_3, %c0_4] : memref<128x1xf32, #tpu.memory_space<vmem>>, vector<128x1xf32>
    %5 = vector.broadcast %4 : vector<128x1xf32> to vector<128x2xf32>
    %6 = arith.addf %3, %5 : vector<128x2xf32>
    %cst_5 = arith.constant 0.000000e+00 : f32
    %7 = vector.broadcast %cst_5 : f32 to vector<128x2xf32>
    %8 = arith.maximumf %6, %7 : vector<128x2xf32>
    %c0_6 = arith.constant 0 : index
    %c0_7 = arith.constant 0 : index
    %9 = vector.load %arg4[%c0_6, %c0_7] : memref<4x128xbf16, #tpu.memory_space<vmem>>, vector<4x128xbf16>
    %10 = arith.truncf %8 : vector<128x2xf32> to vector<128x2xbf16>
    %cst_8 = arith.constant dense<0.000000e+00> : vector<4x2xf32>
    %11 = tpu.matmul %9, %10, %cst_8 {dimension_numbers = #tpu.dot_dimension_numbers<[1], [0], [0], [1], [0, 0, 1, 1], [], []>} : vector<4x128xbf16>, vector<128x2xbf16>, vector<4x2xf32> -> vector<4x2xf32>
    %c0_9 = arith.constant 0 : index
    %c0_10 = arith.constant 0 : index
    %12 = vector.load %arg5[%c0_9, %c0_10] : memref<4x1xf32, #tpu.memory_space<vmem>>, vector<4x1xf32>
    %13 = vector.broadcast %12 : vector<4x1xf32> to vector<4x2xf32>
    %14 = arith.addf %11, %13 : vector<4x2xf32>
    %cst_11 = arith.constant dense<0xFF800000> : vector<2xf32>
    %15 = vector.multi_reduction <maximumf>, %14, %cst_11 [0] : vector<4x2xf32> to vector<2xf32>
    %16 = vector.shape_cast %15 : vector<2xf32> to vector<1x2xf32>
    %17 = vector.broadcast %16 : vector<1x2xf32> to vector<4x2xf32>
    %18 = arith.subf %14, %17 : vector<4x2xf32>
    %19 = math.exp %18 : vector<4x2xf32>
    %cst_12 = arith.constant dense<0.000000e+00> : vector<2xf32>
    %20 = vector.multi_reduction <add>, %19, %cst_12 [0] : vector<4x2xf32> to vector<2xf32>
    %21 = vector.shape_cast %20 : vector<2xf32> to vector<1x2xf32>
    %22 = tpu.reciprocal %21 {approx = true} : vector<1x2xf32> -> vector<1x2xf32>
    %23 = vector.broadcast %22 : vector<1x2xf32> to vector<4x2xf32>
    %24 = arith.mulf %19, %23 : vector<4x2xf32>
    %c0_13 = arith.constant 0 : index
    %c0_14 = arith.constant 0 : index
    %25 = vector.load %arg6[%c0_13, %c0_14] : memref<4x2xf32, #tpu.memory_space<vmem>>, vector<4x2xf32>
    tpu.vector_store %arg6[%c0_13, %c0_14], %24 {strides = array<i32>} : memref<4x2xf32, #tpu.memory_space<vmem>>, vector<4x2xf32>,
    return
  }
  func.func @transform_0(%arg0: i32) -> (i32, i32) {
    %c0_i32 = arith.constant 0 : i32
    %c0_i32_0 = arith.constant 0 : i32
    return %c0_i32, %arg0 : i32, i32
  }
  func.func @transform_1(%arg0: i32) -> (i32, i32) {
    %c0_i32 = arith.constant 0 : i32
    %c0_i32_0 = arith.constant 0 : i32
    %c0_i32_1 = arith.constant 0 : i32
    return %c0_i32, %c0_i32_0 : i32, i32
  }
  func.func @transform_2(%arg0: i32) -> (i32, i32) {
    %c0_i32 = arith.constant 0 : i32
    %c0_i32_0 = arith.constant 0 : i32
    %c0_i32_1 = arith.constant 0 : i32
    return %c0_i32, %c0_i32_0 : i32, i32
  }
  func.func @transform_3(%arg0: i32) -> (i32, i32) {
    %c0_i32 = arith.constant 0 : i32
    %c0_i32_0 = arith.constant 0 : i32
    %c0_i32_1 = arith.constant 0 : i32
    return %c0_i32, %c0_i32_0 : i32, i32
  }
  func.func @transform_4(%arg0: i32) -> (i32, i32) {
    %c0_i32 = arith.constant 0 : i32
    %c0_i32_0 = arith.constant 0 : i32
    %c0_i32_1 = arith.constant 0 : i32
    return %c0_i32, %c0_i32_0 : i32, i32
  }
  func.func @transform_5(%arg0: i32) -> (i32, i32) {
    %c0_i32 = arith.constant 0 : i32
    %c0_i32_0 = arith.constant 0 : i32
    return %c0_i32, %arg0 : i32, i32
  }
}

</mosaic_0001>

<llo_original>
// kernel: policy_forward.1
$region0: #{policy_forward.1}
  #allocation0 [shape = 'u32[]', space=smem, size = 0x4, offset = 0x4, fixed_abs, tag = 'smem constant byte address 0x4 - core index']
  #allocation1 [shape = 'u32[144,128]{1,0:T(1,128)}', space=vmem, size = 0x12000, scoped, tag = 'internal scratch']
  %s0 = inlined_call_operand.vmem [shape: f32[10,2], index: 0, kind: input, shape index: {}]
  %s1 = inlined_call_operand.vmem [shape: bf16[128,10], index: 1, kind: input, shape index: {}]
  %s2 = inlined_call_operand.vmem [shape: f32[128,1], index: 2, kind: input, shape index: {}]
  %s3 = inlined_call_operand.vmem [shape: bf16[4,128], index: 3, kind: input, shape index: {}]
  %s4 = inlined_call_operand.vmem [shape: f32[4,1], index: 4, kind: input, shape index: {}]
  %s5 = inlined_call_operand.vmem [shape: f32[4,2], index: 5, kind: output, shape index: {}]
  %s6 = sld [smem:[#allocation0]]
  $region30: #{policy_forward.1} parent=0
    _
  %s8 = ssub.s32 1, %s6
  %s9 = scalar_select 0, %s8, %s6
  // Predicated region
  $region2: #{policy_forward.1} parent=0 // pred_check
    _
  $region3: #{policy_forward.1} parent=0 // pred_check_branch
    %11 = sbr.rel (0) target = $region5
  $region4: #{policy_forward.1} parent=0 // pred_region
    _
  $region5: #{policy_forward.1} parent=0 // pred_fallthru
    _
  // Predicated region
  $region6: #{policy_forward.1} parent=0 // pred_check
    _
  $region7: #{policy_forward.1} parent=0 // pred_check_branch
    %13 = sbr.rel (0) target = $region9
  $region8: #{policy_forward.1} parent=0 // pred_region
    _
  $region9: #{policy_forward.1} parent=0 // pred_fallthru
    _
  // Predicated region
  $region10: #{policy_forward.1} parent=0 // pred_check
    _
  $region11: #{policy_forward.1} parent=0 // pred_check_branch
    %15 = sbr.rel (0) target = $region13
  $region12: #{policy_forward.1} parent=0 // pred_region
    _
  $region13: #{policy_forward.1} parent=0 // pred_fallthru
    _
  // Predicated region
  $region14: #{policy_forward.1} parent=0 // pred_check
    _
  $region15: #{policy_forward.1} parent=0 // pred_check_branch
    %17 = sbr.rel (0) target = $region17
  $region16: #{policy_forward.1} parent=0 // pred_region
    _
  $region17: #{policy_forward.1} parent=0 // pred_fallthru
    _
  // Predicated region
  $region18: #{policy_forward.1} parent=0 // pred_check
    _
  $region19: #{policy_forward.1} parent=0 // pred_check_branch
    %19 = sbr.rel (0) target = $region21
  $region20: #{policy_forward.1} parent=0 // pred_region
    _
  $region21: #{policy_forward.1} parent=0 // pred_fallthru
    _
  %v21 = vld [vmem:[%s0] sm:$0xff]
  %v22 = vld [vmem:[%s0 + $0x8] sm:$0x3]
  %v23 = vpack.c.bf16 %v22, %v21
  %v24 = vld [vmem:[%s1] sm:$0xf]
  %v25 = vld [vmem:[%s1 + $0x4] sm:$0xf]
  %v26 = vld [vmem:[%s1 + $0x8] sm:$0xf]
  %v27 = vld [vmem:[%s1 + $0xc] sm:$0xf]
  %v28 = vld [vmem:[%s1 + $0x10] sm:$0xf]
  %v29 = vld [vmem:[%s1 + $0x14] sm:$0xf]
  %v30 = vld [vmem:[%s1 + $0x18] sm:$0xf]
  %v31 = vld [vmem:[%s1 + $0x1c] sm:$0xf]
  %v32 = vld [vmem:[%s1 + $0x20] sm:$0xf]
  %v33 = vld [vmem:[%s1 + $0x24] sm:$0xf]
  %v34 = vld [vmem:[%s1 + $0x28] sm:$0xf]
  %v35 = vld [vmem:[%s1 + $0x2c] sm:$0xf]
  %v36 = vld [vmem:[%s1 + $0x30] sm:$0xf]
  %v37 = vld [vmem:[%s1 + $0x34] sm:$0xf]
  %v38 = vld [vmem:[%s1 + $0x38] sm:$0xf]
  %v39 = vld [vmem:[%s1 + $0x3c] sm:$0xf]
  %v40 = vld [vmem:[%s2] sm:$0xff]
  %v41 = vld [vmem:[%s2 + $0x8] sm:$0xff]
  %v42 = vld [vmem:[%s2 + $0x10] sm:$0xff]
  %v43 = vld [vmem:[%s2 + $0x18] sm:$0xff]
  %v44 = vld [vmem:[%s2 + $0x20] sm:$0xff]
  %v45 = vld [vmem:[%s2 + $0x28] sm:$0xff]
  %v46 = vld [vmem:[%s2 + $0x30] sm:$0xff]
  %v47 = vld [vmem:[%s2 + $0x38] sm:$0xff]
  %v48 = vld [vmem:[%s2 + $0x40] sm:$0xff]
  %v49 = vld [vmem:[%s2 + $0x48] sm:$0xff]
  %v50 = vld [vmem:[%s2 + $0x50] sm:$0xff]
  %v51 = vld [vmem:[%s2 + $0x58] sm:$0xff]
  %v52 = vld [vmem:[%s2 + $0x60] sm:$0xff]
  %v53 = vld [vmem:[%s2 + $0x68] sm:$0xff]
  %v54 = vld [vmem:[%s2 + $0x70] sm:$0xff]
  %v55 = vld [vmem:[%s2 + $0x78] sm:$0xff]
  %57 = vset.pattern.permute.xlu0 0
  %58 = vperm.xlu0 %57, %v40
  %v59 = vpop.permute.xlu0 %58
  %62 = vset.pattern.permute.xlu0 0
  %63 = vperm.xlu0 %62, %v41
  %v64 = vpop.permute.xlu0 %63
  %67 = vset.pattern.permute.xlu0 0
  %68 = vperm.xlu0 %67, %v42
  %v69 = vpop.permute.xlu0 %68
  %72 = vset.pattern.permute.xlu0 0
  %73 = vperm.xlu0 %72, %v43
  %v74 = vpop.permute.xlu0 %73
  %77 = vset.pattern.permute.xlu0 0
  %78 = vperm.xlu0 %77, %v44
  %v79 = vpop.permute.xlu0 %78
  %82 = vset.pattern.permute.xlu0 0
  %83 = vperm.xlu0 %82, %v45
  %v84 = vpop.permute.xlu0 %83
  %87 = vset.pattern.permute.xlu0 0
  %88 = vperm.xlu0 %87, %v46
  %v89 = vpop.permute.xlu0 %88
  %92 = vset.pattern.permute.xlu0 0
  %93 = vperm.xlu0 %92, %v47
  %v94 = vpop.permute.xlu0 %93
  %97 = vset.pattern.permute.xlu0 0
  %98 = vperm.xlu0 %97, %v48
  %v99 = vpop.permute.xlu0 %98
  %102 = vset.pattern.permute.xlu0 0
  %103 = vperm.xlu0 %102, %v49
  %v104 = vpop.permute.xlu0 %103
  %107 = vset.pattern.permute.xlu0 0
  %108 = vperm.xlu0 %107, %v50
  %v109 = vpop.permute.xlu0 %108
  %112 = vset.pattern.permute.xlu0 0
  %113 = vperm.xlu0 %112, %v51
  %v114 = vpop.permute.xlu0 %113
  %117 = vset.pattern.permute.xlu0 0
  %118 = vperm.xlu0 %117, %v52
  %v119 = vpop.permute.xlu0 %118
  %122 = vset.pattern.permute.xlu0 0
  %123 = vperm.xlu0 %122, %v53
  %v124 = vpop.permute.xlu0 %123
  %127 = vset.pattern.permute.xlu0 0
  %128 = vperm.xlu0 %127, %v54
  %v129 = vpop.permute.xlu0 %128
  %132 = vset.pattern.permute.xlu0 0
  %133 = vperm.xlu0 %132, %v55
  %v134 = vpop.permute.xlu0 %133
  %v152 = vunpack.c.l.b16 %v24
  %v153 = vunpack.c.l.b16 %v25
  %v154 = vunpack.c.l.b16 %v26
  %v155 = vunpack.c.l.b16 %v27
  %v156 = vunpack.c.l.b16 %v28
  %v157 = vunpack.c.l.b16 %v29
  %v158 = vunpack.c.l.b16 %v30
  %v159 = vunpack.c.l.b16 %v31
  %v160 = vunpack.c.l.b16 %v32
  %v161 = vunpack.c.l.b16 %v33
  %v162 = vunpack.c.l.b16 %v34
  %v163 = vunpack.c.l.b16 %v35
  %v164 = vunpack.c.l.b16 %v36
  %v165 = vunpack.c.l.b16 %v37
  %v166 = vunpack.c.l.b16 %v38
  %v167 = vunpack.c.l.b16 %v39
  %v168 = vpack.c.b16 %v153, %v152
  %v169 = vpack.c.b16 %v155, %v154
  %v170 = vpack.c.b16 %v157, %v156
  %v171 = vpack.c.b16 %v159, %v158
  %v172 = vpack.c.b16 %v161, %v160
  %v173 = vpack.c.b16 %v163, %v162
  %v174 = vpack.c.b16 %v165, %v164
  %v175 = vpack.c.b16 %v167, %v166
  %vm176 = vcmask 80896
  %v178 = vsel %vm176, %v168, 0
  %v181 = vsel %vm176, %v169, 0
  %v184 = vsel %vm176, %v170, 0
  %v187 = vsel %vm176, %v171, 0
  %v190 = vsel %vm176, %v172, 0
  %v193 = vsel %vm176, %v173, 0
  %v196 = vsel %vm176, %v174, 0
  %v199 = vsel %vm176, %v175, 0
  %vm201 = vcmask 1044480
  %v203 = vsel %vm201, %v23, 0
  %205 = vmatprep.subr.bf16.mxu0 0
  %206 = vmatpush1.bf16.msra.mxu0 %v203
  %207 = vmatprep.subr.bf16.mxu0 0
  %208 = vmatpush1.bf16.msra.mxu0 0
  %209 = vmatprep.subr.bf16.mxu0 0
  %210 = vmatpush1.bf16.msra.mxu0 0
  %211 = vmatprep.subr.bf16.mxu0 0
  %212 = vmatpush1.bf16.msra.mxu0 0
  %213 = vmatprep.subr.bf16.mxu0 0
  %214 = vmatpush1.bf16.msra.mxu0 0
  %215 = vmatprep.subr.bf16.mxu0 0
  %216 = vmatpush1.bf16.msra.mxu0 0
  %217 = vmatprep.subr.bf16.mxu0 0
  %218 = vmatpush1.bf16.msra.mxu0 0
  %219 = vmatprep.subr.bf16.mxu0 0
  %220 = vmatpush1.bf16.msra.mxu0 0
  %221 = vmatprep.subr.bf16.mxu0 0
  %222 = vmatpush1.bf16.msra.mxu0 0
  %223 = vmatprep.subr.bf16.mxu0 0
  %224 = vmatpush1.bf16.msra.mxu0 0
  %225 = vmatprep.subr.bf16.mxu0 0
  %226 = vmatpush1.bf16.msra.mxu0 0
  %227 = vmatprep.subr.bf16.mxu0 0
  %228 = vmatpush1.bf16.msra.mxu0 0
  %229 = vmatprep.subr.bf16.mxu0 0
  %230 = vmatpush1.bf16.msra.mxu0 0
  %231 = vmatprep.subr.bf16.mxu0 0
  %232 = vmatpush1.bf16.msra.mxu0 0
  %233 = vmatprep.subr.bf16.mxu0 0
  %234 = vmatpush1.bf16.msra.mxu0 0
  %235 = vmatprep.subr.bf16.mxu0 0
  %236 = vmatpush1.bf16.msra.mxu0 0
  %237 = vmatprep.mubr.bf16.mxu0 0
  %238 = vmatmul.mubr.bf16.gmra.mrb[0].mxu0 %v178
  %v239 = vpop.f32.mrb[0].mxu0
  %v240 = vadd.f32 %v59, %v239
  %v241 = vpop.f32.mrb[0].mxu0
  %v242 = vpop.f32.mrb[0].mxu0
  %v243 = vadd.f32 %v64, %v242
  %v244 = vpop.f32.mrb[0].mxu0
  %245 = vmatprep.mubr.bf16.mxu0 0
  %246 = vmatmul.mubr.bf16.gmra.mrb[0].mxu0 %v181
  %v247 = vpop.f32.mrb[0].mxu0
  %v248 = vadd.f32 %v69, %v247
  %v249 = vpop.f32.mrb[0].mxu0
  %v250 = vpop.f32.mrb[0].mxu0
  %v251 = vadd.f32 %v74, %v250
  %v252 = vpop.f32.mrb[0].mxu0
  %253 = vmatprep.mubr.bf16.mxu0 0
  %254 = vmatmul.mubr.bf16.gmra.mrb[0].mxu0 %v184
  %v255 = vpop.f32.mrb[0].mxu0
  %v256 = vadd.f32 %v79, %v255
  %v257 = vpop.f32.mrb[0].mxu0
  %v258 = vpop.f32.mrb[0].mxu0
  %v259 = vadd.f32 %v84, %v258
  %v260 = vpop.f32.mrb[0].mxu0
  %261 = vmatprep.mubr.bf16.mxu0 0
  %262 = vmatmul.mubr.bf16.gmra.mrb[0].mxu0 %v187
  %v263 = vpop.f32.mrb[0].mxu0
  %v264 = vadd.f32 %v89, %v263
  %v265 = vpop.f32.mrb[0].mxu0
  %v266 = vpop.f32.mrb[0].mxu0
  %v267 = vadd.f32 %v94, %v266
  %v268 = vpop.f32.mrb[0].mxu0
  %269 = vmatprep.mubr.bf16.mxu0 0
  %270 = vmatmul.mubr.bf16.gmra.mrb[0].mxu0 %v190
  %v271 = vpop.f32.mrb[0].mxu0
  %v272 = vadd.f32 %v99, %v271
  %v273 = vpop.f32.mrb[0].mxu0
  %v274 = vpop.f32.mrb[0].mxu0
  %v275 = vadd.f32 %v104, %v274
  %v276 = vpop.f32.mrb[0].mxu0
  %277 = vmatprep.mubr.bf16.mxu0 0
  %278 = vmatmul.mubr.bf16.gmra.mrb[0].mxu0 %v193
  %v279 = vpop.f32.mrb[0].mxu0
  %v280 = vadd.f32 %v109, %v279
  %v281 = vpop.f32.mrb[0].mxu0
  %v282 = vpop.f32.mrb[0].mxu0
  %v283 = vadd.f32 %v114, %v282
  %v284 = vpop.f32.mrb[0].mxu0
  %285 = vmatprep.mubr.bf16.mxu0 0
  %286 = vmatmul.mubr.bf16.gmra.mrb[0].mxu0 %v196
  %v287 = vpop.f32.mrb[0].mxu0
  %v288 = vadd.f32 %v119, %v287
  %v289 = vpop.f32.mrb[0].mxu0
  %v290 = vpop.f32.mrb[0].mxu0
  %v291 = vadd.f32 %v124, %v290
  %v292 = vpop.f32.mrb[0].mxu0
  %293 = vmatprep.mubr.bf16.mxu0 0
  %294 = vmatmul.mubr.bf16.gmra.mrb[0].mxu0 %v199
  %v295 = vpop.f32.mrb[0].mxu0
  %v296 = vadd.f32 %v129, %v295
  %v297 = vpop.f32.mrb[0].mxu0
  %v298 = vpop.f32.mrb[0].mxu0
  %v299 = vadd.f32 %v134, %v298
  %v300 = vpop.f32.mrb[0].mxu0
  %301 = vdwg.mxu0
  %v302 = vmax.f32 %v240, 0.0
  %v303 = vmax.f32 %v243, 0.0
  %v304 = vmax.f32 %v248, 0.0
  %v305 = vmax.f32 %v251, 0.0
  %v306 = vmax.f32 %v256, 0.0
  %v307 = vmax.f32 %v259, 0.0
  %v308 = vmax.f32 %v264, 0.0
  %v309 = vmax.f32 %v267, 0.0
  %v310 = vmax.f32 %v272, 0.0
  %v311 = vmax.f32 %v275, 0.0
  %v312 = vmax.f32 %v280, 0.0
  %v313 = vmax.f32 %v283, 0.0
  %v314 = vmax.f32 %v288, 0.0
  %v315 = vmax.f32 %v291, 0.0
  %v316 = vmax.f32 %v296, 0.0
  %v317 = vmax.f32 %v299, 0.0
  %v318 = vld [vmem:[%s3] sm:$0x3]
  %v319 = vpack.c.bf16 %v303, %v302
  %v320 = vpack.c.bf16 %v305, %v304
  %v321 = vpack.c.bf16 %v307, %v306
  %v322 = vpack.c.bf16 %v309, %v308
  %v323 = vpack.c.bf16 %v311, %v310
  %v324 = vpack.c.bf16 %v313, %v312
  %v325 = vpack.c.bf16 %v315, %v314
  %v326 = vpack.c.bf16 %v317, %v316
  %v327 = vld [vmem:[%s4] sm:$0xf]
  %329 = vset.pattern.permute.xlu0 0
  %330 = vperm.xlu0 %329, %v327
  %v331 = vpop.permute.xlu0 %330
  %333 = vmatprep.subr.bf16.mxu0 0
  %334 = vmatpush1.bf16.msra.mxu0 %v319
  %335 = vmatprep.subr.bf16.mxu0 0
  %336 = vmatpush1.bf16.msra.mxu0 %v320
  %337 = vmatprep.subr.bf16.mxu0 0
  %338 = vmatpush1.bf16.msra.mxu0 %v321
  %339 = vmatprep.subr.bf16.mxu0 0
  %340 = vmatpush1.bf16.msra.mxu0 %v322
  %341 = vmatprep.subr.bf16.mxu0 0
  %342 = vmatpush1.bf16.msra.mxu0 %v323
  %343 = vmatprep.subr.bf16.mxu0 0
  %344 = vmatpush1.bf16.msra.mxu0 %v324
  %345 = vmatprep.subr.bf16.mxu0 0
  %346 = vmatpush1.bf16.msra.mxu0 %v325
  %347 = vmatprep.subr.bf16.mxu0 0
  %348 = vmatpush1.bf16.msra.mxu0 %v326
  %349 = vmatprep.subr.bf16.mxu0 0
  %350 = vmatpush1.bf16.msra.mxu0 0
  %351 = vmatprep.subr.bf16.mxu0 0
  %352 = vmatpush1.bf16.msra.mxu0 0
  %353 = vmatprep.subr.bf16.mxu0 0
  %354 = vmatpush1.bf16.msra.mxu0 0
  %355 = vmatprep.subr.bf16.mxu0 0
  %356 = vmatpush1.bf16.msra.mxu0 0
  %357 = vmatprep.subr.bf16.mxu0 0
  %358 = vmatpush1.bf16.msra.mxu0 0
  %359 = vmatprep.subr.bf16.mxu0 0
  %360 = vmatpush1.bf16.msra.mxu0 0
  %361 = vmatprep.subr.bf16.mxu0 0
  %362 = vmatpush1.bf16.msra.mxu0 0
  %363 = vmatprep.subr.bf16.mxu0 0
  %364 = vmatpush1.bf16.msra.mxu0 0
  %365 = vmatprep.mubr.bf16.mxu0 0
  %366 = vmatmul.mubr.bf16.gmra.mrb[0].mxu0 %v318
  %v367 = vpop.f32.mrb[0].mxu0
  %v368 = vadd.f32 %v331, %v367
  %v369 = vpop.f32.mrb[0].mxu0
  %v370 = vpop.f32.mrb[0].mxu0
  %v371 = vpop.f32.mrb[0].mxu0
  %372 = vdwg.mxu0
  %vm373 = vcmask 11264
  %v374 = vsel %vm373, %v368, -inf
  %v375 = vrot.slane %v374, 4
  %v376 = vmax.f32 %v374, %v375
  %v377 = vrot.slane %v376, 2
  %v378 = vmax.f32 %v376, %v377
  %v379 = vrot.slane %v378, 1
  %v380 = vmax.f32 %v378, %v379
  %v381 = vsub.f32 %v368, %v380
  %v382 = vmul.f32 %v381, 1.442695
  %v383 = vpow.pop %v382
  %v384 = vsel %vm373, %v383, 0.0
  %v385 = vrot.slane %v384, 4
  %v386 = vadd.f32 %v384, %v385
  %v387 = vrot.slane %v386, 2
  %v388 = vadd.f32 %v386, %v387
  %v389 = vrot.slane %v388, 1
  %v390 = vadd.f32 %v388, %v389
  %v391 = vrcp.pop %v390
  %v392 = vmul.f32 %v383, %v391
  %393 = vst.msk [vmem:[%s5] sm:$0xf] %vm373, %v392
  // Predicated region
  $region22: #{policy_forward.1} parent=0 // pred_check
    _
  $region23: #{policy_forward.1} parent=0 // pred_check_branch
    %395 = sbr.rel (0) target = $region25
  $region24: #{policy_forward.1} parent=0 // pred_region
    _
  $region25: #{policy_forward.1} parent=0 // pred_fallthru
    _
  // Predicated region
  $region26: #{policy_forward.1} parent=0 // pred_check
    _
  $region27: #{policy_forward.1} parent=0 // pred_check_branch
    %397 = sbr.rel (0) target = $region29
  $region28: #{policy_forward.1} parent=0 // pred_region
    _
  $region29: #{policy_forward.1} parent=0 // pred_fallthru
    _

</llo_original>
